<compile_context>
chip_gen: v5e
topology: v5e:2x2
jax: 0.10.0
libtpu: 0.0.40
codegen_flags: <defaults>
</compile_context>

<pallas_src>
import functools

import jax
import jax.numpy as jnp
from jax.experimental import pallas as pl
from jax.experimental.pallas import tpu as pltpu

_LANE = 128
_MIB = 1024 * 1024


def _sublane_pack(dtype):
    """Sublane packing: 8 for 32-bit, 16 for bf16/fp16, 32 for int8/fp8."""
    return max(8, 32 // jnp.dtype(dtype).itemsize)


def _tpu_settings():
    """(target input-tile bytes, vmem_limit_bytes) tuned per TPU generation."""
    try:
        cap = pltpu.get_tpu_info().vmem_capacity_bytes
    except Exception:  # noqa: BLE001 - fall back to the conservative setting
        cap = 0
    if cap >= 96 * _MIB:
        # v5e / v6e: 128 MiB physical VMEM -> larger tiles amortize per-step
        # overhead; generous explicit scoped limit (v5e default is only 16 MiB).
        return 4 * _MIB, 96 * _MIB
    # v7x (64 MiB physical VMEM per TensorCore) or unknown: stay conservative.
    return 2 * _MIB, 48 * _MIB


def _pick_tiles(batch, feat, itemsize, sub, target_bytes):
    """Pick (tb rows, ft lanes) for lane-dense (batch, feat) blocks.

    - ft is a multiple of 128 (or the full feature dim when feat <= 128) so
      every load/store is unmasked and lane-dense; it also bounds VMEM for
      small-batch / huge-feature inputs.
    - tb is a multiple of the dtype's sublane pack (or the full batch).
    - If the grid would collapse to a single step, split batch or features so
      dimension_semantics="parallel" has work to shard across v7x's 2 TCs.
    """
    if feat <= _LANE:
        ft = feat
    else:
        max_ft = max(_LANE, (target_bytes // (sub * itemsize)) // _LANE * _LANE)
        ft = feat if feat <= max_ft else max_ft

    row_bytes = ft * itemsize
    if batch <= sub:
        tb = batch
    else:
        tb = max(sub, (target_bytes // row_bytes) // sub * sub)
        tb = min(tb, batch)

    if pl.cdiv(batch, tb) * pl.cdiv(feat, ft) < 2:
        if batch >= 2 * sub:
            tb = ((batch + 1) // 2 + sub - 1) // sub * sub
        elif feat >= 2 * _LANE:
            ft = pl.cdiv(pl.cdiv(feat, _LANE), 2) * _LANE
    return tb, ft


# ---------------------------------------------------------------------------
# Fast path: two-sided ReLU (CReLU), lane-dense flattened layout.
# ---------------------------------------------------------------------------
def _crelu_kernel(x_ref, o_ref):
    x = x_ref[...]
    # Two pure-VPU maxes; both halves are full-width lane-dense stores into the
    # size-2 middle axis of the output block (no in-kernel concatenate).
    o_ref[:, 0, :] = jnp.maximum(x, 0.0).astype(o_ref.dtype)
    o_ref[:, 1, :] = jnp.maximum(-x, 0.0).astype(o_ref.dtype)


def expression_two_sided_relu(x):
    """Pallas equivalent of Expression(two_sided_relu)(x) for NCHW (or 2-D) input."""
    B = x.shape[0]
    feat = 1
    for d in x.shape[1:]:
        feat *= d
    x2 = x.reshape(B, feat)

    itemsize = jnp.dtype(x.dtype).itemsize
    target_bytes, vmem_limit = _tpu_settings()
    sub = _sublane_pack(x.dtype)
    tb, ft = _pick_tiles(B, feat, itemsize, sub, target_bytes)
    grid = (pl.cdiv(B, tb), pl.cdiv(feat, ft))

    cost = pl.CostEstimate(
        flops=3 * B * feat,                       # neg + two maxes per element
        transcendentals=0,
        bytes_accessed=3 * B * feat * itemsize,   # read 1x, write 2x
    )

    out3 = pl.pallas_call(
        _crelu_kernel,
        out_shape=jax.ShapeDtypeStruct((B, 2, feat), x.dtype),
        grid=grid,
        in_specs=[pl.BlockSpec((tb, ft), lambda i, j: (i, j))],
        out_specs=pl.BlockSpec((tb, 2, ft), lambda i, j: (i, 0, j)),
        compiler_params=pltpu.CompilerParams(
            dimension_semantics=("parallel", "parallel"),
            vmem_limit_bytes=vmem_limit,
        ),
        cost_estimate=cost,
    )(x2)

    # (B, 2, feat) -> (B, 2C, H, W): pure metadata (2 and C are adjacent and
    # contiguous), layout-identical to the PyTorch channel-dim concatenate.
    out_shape = (B, 2 * x.shape[1]) + x.shape[2:]
    return out3.reshape(out_shape)


# ---------------------------------------------------------------------------
# Elementwise fallback: arbitrary per-element funcs on a lane-dense layout.
# ---------------------------------------------------------------------------
def _apply_func_kernel(x_ref, o_ref, *, func):
    o_ref[...] = func(x_ref[...]).astype(o_ref.dtype)


def _expression_elementwise(func, x):
    B = x.shape[0]
    feat = 1
    for d in x.shape[1:]:
        feat *= d
    x2 = x.reshape(B, feat)

    out_dtype = jax.eval_shape(func, jax.ShapeDtypeStruct((8, _LANE), x.dtype)).dtype
    itemsize = max(jnp.dtype(x.dtype).itemsize, jnp.dtype(out_dtype).itemsize)
    target_bytes, vmem_limit = _tpu_settings()
    sub = _sublane_pack(x.dtype)
    tb, ft = _pick_tiles(B, feat, itemsize, sub, target_bytes)

    out2 = pl.pallas_call(
        functools.partial(_apply_func_kernel, func=func),
        out_shape=jax.ShapeDtypeStruct((B, feat), out_dtype),
        grid=(pl.cdiv(B, tb), pl.cdiv(feat, ft)),
        in_specs=[pl.BlockSpec((tb, ft), lambda i, j: (i, j))],
        out_specs=pl.BlockSpec((tb, ft), lambda i, j: (i, j)),
        compiler_params=pltpu.CompilerParams(
            dimension_semantics=("parallel", "parallel"),
            vmem_limit_bytes=vmem_limit,
        ),
    )(x2)
    return out2.reshape(x.shape)


# ---------------------------------------------------------------------------
# Generic fallback: arbitrary per-batch funcs (flatten, reshape, ...).
# ---------------------------------------------------------------------------
def _expression_generic(func, x):
    """Generic Pallas wrapper: `func` must act independently per batch element."""
    B = x.shape[0]
    feat = 1
    for d in x.shape[1:]:
        feat *= d
    itemsize = jnp.dtype(x.dtype).itemsize
    target_bytes, vmem_limit = _tpu_settings()
    sub = _sublane_pack(x.dtype)
    if B <= sub or B * feat * itemsize <= target_bytes:
        tb = B
    else:
        tb = max(sub, (target_bytes // (feat * itemsize)) // sub * sub)
        tb = min(tb, B)

    in_block = (tb,) + x.shape[1:]
    per_blk_out = jax.eval_shape(func, jax.ShapeDtypeStruct(in_block, x.dtype))
    assert per_blk_out.shape[0] == tb, "func must preserve the batch dimension"
    out_block = per_blk_out.shape
    out_shape = jax.ShapeDtypeStruct((B,) + out_block[1:], per_blk_out.dtype)

    n_in = len(in_block)
    n_out = len(out_block)

    # TODO(synk): blocks here keep the original (tb, C, H, W) layout (lane axis
    # = W, lane-sparse); prefer the elementwise path when possible.  Funcs that
    # mix rows within a block (even while preserving batch) are not supported
    # because the last block may contain padded rows.
    return pl.pallas_call(
        functools.partial(_apply_func_kernel, func=func),
        out_shape=out_shape,
        grid=(pl.cdiv(B, tb),),
        in_specs=[pl.BlockSpec(in_block, lambda i: (i,) + (0,) * (n_in - 1))],
        out_specs=pl.BlockSpec(out_block, lambda i: (i,) + (0,) * (n_out - 1)),
        compiler_params=pltpu.CompilerParams(
            dimension_semantics=("parallel",),
            vmem_limit_bytes=vmem_limit,
        ),
    )(x)


def two_sided_relu(x):
    # Reference CReLU in NCHW, as the PyTorch model wraps it in Expression.
    return jnp.concatenate([jnp.maximum(x, 0.0), jnp.maximum(-x, 0.0)], axis=1)


def expression(func, x, *, elementwise=False):
    """Pallas equivalent of Expression(func)(x)."""
    if func is two_sided_relu:
        return expression_two_sided_relu(x)
    if elementwise:
        return _expression_elementwise(func, x)
    return _expression_generic(func, x)


if __name__ == "__main__":
    # Expression has no parameters, so there is nothing to initialize.
    key = jax.random.PRNGKey(0)
    B, C, H, W = 2, 4, 16, 16
    x = jax.random.normal(key, (B, C, H, W), dtype=jnp.float32)

    # Fast CReLU path (feat = 1024 -> grid (1, 2), both feature halves lane-dense).
    out = jax.block_until_ready(expression(two_sided_relu, x))
    ref = two_sided_relu(x)
    assert out.shape == (B, 2 * C, H, W), out.shape
    assert jnp.allclose(out, ref, atol=1e-6), "CReLU mismatch vs reference"

    # Elementwise fallback (lane-dense flattened layout).
    scale = lambda t: t * 0.5
    out2 = jax.block_until_ready(expression(scale, x, elementwise=True))
    assert jnp.allclose(out2, x * 0.5, atol=1e-6), "scale mismatch vs reference"

    # Generic per-batch fallback (e.g. a flatten Expression).
    flatten = lambda t: t.reshape(t.shape[0], -1)
    out3 = jax.block_until_ready(expression(flatten, x))
    assert out3.shape == (B, C * H * W), out3.shape
    assert jnp.allclose(out3, x.reshape(B, -1), atol=1e-6), "flatten mismatch"

    print("KERNEL_OK")
</pallas_src>

<mosaic_0001>
module attributes {stable_mosaic.version = 11 : i64} {
  func.func @_crelu_kernel(%arg0: i32, %arg1: i32, %arg2: memref<2x512xf32, #tpu.memory_space<vmem>>, %arg3: memref<2x2x512xf32, #tpu.memory_space<vmem>>) attributes {dimension_semantics = [#tpu.dimension_semantics<parallel>, #tpu.dimension_semantics<parallel>], iteration_bounds = array<i64: 1, 2>, scalar_prefetch = 0 : i64, scratch_operands = 0 : i64, tpu.core_type = #tpu.core_type<tc>, window_params = [{transform_indices = @transform_0, window_bounds = array<i64: 2, 512>}, {transform_indices = @transform_1, window_bounds = array<i64: 2, 2, 512>}]} {
    %c0 = arith.constant 0 : index
    %c0_0 = arith.constant 0 : index
    %0 = vector.load %arg2[%c0, %c0_0] : memref<2x512xf32, #tpu.memory_space<vmem>>, vector<2x512xf32>
    %cst = arith.constant 0.000000e+00 : f32
    %1 = vector.broadcast %cst : f32 to vector<2x512xf32>
    %2 = arith.maximumf %0, %1 : vector<2x512xf32>
    %c0_1 = arith.constant 0 : index
    %c0_2 = arith.constant 0 : index
    %c0_3 = arith.constant 0 : index
    %3 = vector.load %arg3[%c0_1, %c0_2, %c0_3] : memref<2x2x512xf32, #tpu.memory_space<vmem>>, vector<2x1x512xf32>
    %4 = vector.shape_cast %3 : vector<2x1x512xf32> to vector<2x512xf32>
    %5 = vector.shape_cast %2 : vector<2x512xf32> to vector<2x1x512xf32>
    tpu.vector_store %arg3[%c0_1, %c0_2, %c0_3], %5 {strides = array<i32>} : memref<2x2x512xf32, #tpu.memory_space<vmem>>, vector<2x1x512xf32>,
    %cst_4 = arith.constant 0.000000e+00 : f32
    %6 = vector.broadcast %cst_4 : f32 to vector<2x512xf32>
    %7 = arith.subf %6, %0 : vector<2x512xf32>
    %cst_5 = arith.constant 0.000000e+00 : f32
    %8 = vector.broadcast %cst_5 : f32 to vector<2x512xf32>
    %9 = arith.maximumf %7, %8 : vector<2x512xf32>
    %c0_6 = arith.constant 0 : index
    %c1 = arith.constant 1 : index
    %c0_7 = arith.constant 0 : index
    %10 = vector.load %arg3[%c0_6, %c1, %c0_7] : memref<2x2x512xf32, #tpu.memory_space<vmem>>, vector<2x1x512xf32>
    %11 = vector.shape_cast %10 : vector<2x1x512xf32> to vector<2x512xf32>
    %12 = vector.shape_cast %9 : vector<2x512xf32> to vector<2x1x512xf32>
    tpu.vector_store %arg3[%c0_6, %c1, %c0_7], %12 {strides = array<i32>} : memref<2x2x512xf32, #tpu.memory_space<vmem>>, vector<2x1x512xf32>,
    return
  }
  func.func @transform_0(%arg0: i32, %arg1: i32) -> (i32, i32) {
    %c0_i32 = arith.constant 0 : i32
    return %arg0, %arg1 : i32, i32
  }
  func.func @transform_1(%arg0: i32, %arg1: i32) -> (i32, i32, i32) {
    %c0_i32 = arith.constant 0 : i32
    %c0_i32_0 = arith.constant 0 : i32
    return %arg0, %c0_i32, %arg1 : i32, i32, i32
  }
}

</mosaic_0001>

<llo_original>
// kernel: tpu_custom_call.1
$region0: #{tpu_custom_call.1}
  #allocation0 [shape = 'u32[]', space=smem, size = 0x4, offset = 0x4, fixed_abs, tag = 'smem constant byte address 0x4 - core index']
  #allocation1 [shape = 'u32[72,128]{1,0:T(1,128)}', space=vmem, size = 0x9000, scoped, tag = 'internal scratch']
  %s0 = inlined_call_operand.hbm [shape: f32[2,1024], index: 0, kind: input, shape index: {}]
  %s1 = inlined_call_operand.hbm [shape: f32[2,2,1024], index: 1, kind: output, shape index: {}]
  %s2 = sld [smem:[#allocation0]]
  $region41: #{tpu_custom_call.1} parent=0
    _
  %s4 = ssub.s32 1, %s2
  %s5 = scalar_select 0, %s4, %s2
  $region1: #{tpu_custom_call.1} parent=0
    #allocation2 [shape = 'u8[8192]{0}', space=vmem, size = 0x2000, scoped, tag = 'input window, operand 0']
    #allocation3 [shape = 's32[2]{0}', space=sflag, size = 0x8, scoped, tag = 'scoped memory for tpu_custom_call.1']
    #allocation4 [shape = 's32[2]{0}', space=sflag, size = 0x8, scoped, tag = 'scoped memory for tpu_custom_call.1']
    #allocation5 [shape = 'u8[16384]{0}', space=vmem, size = 0x4000, scoped, tag = 'output window, operand 0']
    %6 = vsyncpa [#allocation3], 0
    %s7 = scalar_lea.sflag [#allocation3], 1
    %8 = vsyncpa %s7, 0
    %9 = vsyncpa [#allocation4], 0
    %s10 = scalar_lea.sflag [#allocation4], 1
    %11 = vsyncpa %s10, 0
    loop: start=0, step=1, limit=4
    $region2: #{tpu_custom_call.1} parent=1 // loop_pre_header
      _
    $region3: #{tpu_custom_call.1} parent=1 // loop_header
      %s13 = sphi 0, %s17
      %p14 = scmp.ge.s32.totalorder %s13, 4
      %s20 = sphi 0, %s32
      %s21 = sphi 0, %s28
      %s22 = sphi 0, %s20
      %s23 = sphi 0, %s21
      %s24 = sphi 0, %s22
      %s25 = sphi 0, %s23
      %s37 = sphi 0, %s39
      %s40 = sphi 0, %s37
      %s41 = sphi 0, %s40
      %s57 = sphi 0, %s41
      %s65 = sphi 0, %s67
      %s68 = sphi 0, %s65
      %s69 = sphi 0, %s68
      %s85 = sphi 0, %s69
    $region4: #{tpu_custom_call.1} parent=1 // loop_header_branch
      %16 = sbr.rel (%p14) target = $region8
    $region5: #{tpu_custom_call.1} parent=1 // loop_body
      %s18 = ssub.s32 %s13, 1
      %s19 = ssub.s32 %s13, 2
      %s26 = sadd.s32 1, %s21
      %p27 = scmp.ge.s32.totalorder %s26, 2
      %s28 = scalar_select %p27, 0, %s26
      %s29 = sadd.s32 1, %s20
      %s30 = scalar_select %p27, %s29, %s20
      %p31 = scmp.ge.s32.totalorder %s30, 1
      %s32 = scalar_select %p31, 0, %s30
      %s33 = ssub.s32 %s20, %s32
      %s34 = ssub.s32 %s21, %s28
      %s35 = sor.u32 %s33, %s34
      %p36 = scmp.eq.s32.totalorder %s35, 0
      %s38 = sadd.s32 %s37, 1
      %s39 = scalar_select %p36, %s37, %s38
      %p42 = pneg %p36
      %p43 = scmp.eq.s32.totalorder %s13, 1
      %p44 = por %p42, %p43
      %p45 = scmp.ne.s32.totalorder %s37, %s40
      %p46 = scmp.eq.s32.totalorder %s13, 0
      %p47 = por %p45, %p46
      %p48 = scmp.ne.s32.totalorder %s37, %s40
      %p49 = scmp.eq.s32.totalorder %s18, 1
      %p50 = por %p48, %p49
      %p51 = scmp.ne.s32.totalorder %s40, %s41
      %p52 = scmp.eq.s32.totalorder %s18, 0
      %p53 = por %p51, %p52
      %p54 = scmp.ne.s32.totalorder %s40, %s41
      %p55 = scmp.eq.s32.totalorder %s19, 1
      %p56 = por %p54, %p55
      %p58 = scmp.ne.s32.totalorder %s41, %s57
      %p59 = scmp.eq.s32.totalorder %s19, 0
      %p60 = por %p58, %p59
      %s61 = ssub.s32 %s20, %s32
      %s62 = ssub.s32 %s21, %s28
      %s63 = sor.u32 %s61, %s62
      %p64 = scmp.eq.s32.totalorder %s63, 0
      %s66 = sadd.s32 %s65, 1
      %s67 = scalar_select %p64, %s65, %s66
      %p70 = pneg %p64
      %p71 = scmp.eq.s32.totalorder %s13, 1
      %p72 = por %p70, %p71
      %p73 = scmp.ne.s32.totalorder %s65, %s68
      %p74 = scmp.eq.s32.totalorder %s13, 0
      %p75 = por %p73, %p74
      %p76 = scmp.ne.s32.totalorder %s65, %s68
      %p77 = scmp.eq.s32.totalorder %s18, 1
      %p78 = por %p76, %p77
      %p79 = scmp.ne.s32.totalorder %s68, %s69
      %p80 = scmp.eq.s32.totalorder %s18, 0
      %p81 = por %p79, %p80
      %p82 = scmp.ne.s32.totalorder %s68, %s69
      %p83 = scmp.eq.s32.totalorder %s19, 1
      %p84 = por %p82, %p83
      %p86 = scmp.ne.s32.totalorder %s69, %s85
      %p87 = scmp.eq.s32.totalorder %s19, 0
      %p88 = por %p86, %p87
      %p89 = scmp.le.s32.totalorder 1, %s13
      %p90 = scmp.lt.s32.totalorder %s13, 3
      %p91 = pnand %p89, %p90
      %p92 = pneg %p91
      // Predicated region
      $region9: #{tpu_custom_call.1} parent=5 // pred_check
        _
      $region10: #{tpu_custom_call.1} parent=5 // pred_check_branch
        %94 = sbr.rel (%p91) target = $region12
      $region11: #{tpu_custom_call.1} parent=5 // pred_region
        %s95 = ssub.s32 %s13, 1
      $region12: #{tpu_custom_call.1} parent=5 // pred_fallthru
        _
      %p96 = scmp.lt.s32.totalorder %s13, 2
      // Predicated region
      $region13: #{tpu_custom_call.1} parent=5 // pred_check
        %p97 = pneg %p96
      $region14: #{tpu_custom_call.1} parent=5 // pred_check_branch
        %99 = sbr.rel (%p97) target = $region16
      $region15: #{tpu_custom_call.1} parent=5 // pred_region
        // Predicated region
        $region17: #{tpu_custom_call.1} parent=15 // pred_check
          %p100 = pneg %p47
        $region18: #{tpu_custom_call.1} parent=15 // pred_check_branch
          %102 = sbr.rel (%p100) target = $region20
        $region19: #{tpu_custom_call.1} parent=15 // pred_region
          %s103 = sand.u32 %s37, 1
          %s104 = scalar_lea.sflag [#allocation3], %s103
          %s105 = sand.u32 %s37, 1
          %s106 = smul.addr %s105, 8
          %s107 = scalar_lea.vmem [#allocation2], %s106
          %s108 = smul.u32 4, %s21
          %110 = vsyncadd %s104, 0
          %s111 = smul.addr %s20, 8
          %s112 = sadd.s32 %s108, %s111
          %s113 = smul.addr %s112, 2
          %s114 = scalar_lea.hbm %s0, %s113
          %s116 = sshll.u32 %s114, 4
          %s117 = int_to_ptr.hbm [resolvable:$true] %s116
          %s118 = sshll.u32 %s107, 4
          %s119 = int_to_ptr.vmem [resolvable:$true] %s118
          %121 = dma.hbm_to_vmem [thread:$0]  %s117, 128, %s119, %s104
        $region20: #{tpu_custom_call.1} parent=15 // pred_fallthru
          _
      $region16: #{tpu_custom_call.1} parent=5 // pred_fallthru
        _
      %p122 = scmp.le.s32.totalorder 1, %s13
      %p123 = scmp.lt.s32.totalorder %s13, 3
      %p124 = pnand %p122, %p123
      %p125 = pneg %p124
      // Predicated region
      $region21: #{tpu_custom_call.1} parent=5 // pred_check
        _
      $region22: #{tpu_custom_call.1} parent=5 // pred_check_branch
        %127 = sbr.rel (%p124) target = $region24
      $region23: #{tpu_custom_call.1} parent=5 // pred_region
        %s128 = ssub.s32 %s13, 1
        %s129 = sand.u32 %s40, 1
        %s130 = scalar_lea.sflag [#allocation3], %s129
        %s131 = sand.u32 %s40, 1
        %s132 = smul.addr %s131, 8
        %s133 = scalar_lea.vmem [#allocation2], %s132
        // Predicated region
        $region25: #{tpu_custom_call.1} parent=23 // pred_check
          %p134 = pneg %p53
        $region26: #{tpu_custom_call.1} parent=23 // pred_check_branch
          %136 = sbr.rel (%p134) target = $region28
        $region27: #{tpu_custom_call.1} parent=23 // pred_region
          %138 = dma.done %s130, 128
        $region28: #{tpu_custom_call.1} parent=23 // pred_fallthru
          _
        %s139 = sand.u32 %s40, 1
        %s140 = scalar_lea.sflag [#allocation3], %s139
        %s141 = sand.u32 %s40, 1
        %s142 = smul.addr %s141, 8
        %s143 = scalar_lea.vmem [#allocation2], %s142
        %p144 = pneg %p53
        %p145 = pneg %p50
        %p146 = pneg %p81
        %p147 = pneg %p78
        %s148 = sand.u32 %s68, 1
        %s149 = scalar_lea.sflag [#allocation4], %s148
        %s150 = sand.u32 %s68, 1
        %s151 = smul.addr %s150, 16
        %s152 = scalar_lea.vmem [#allocation5], %s151
        %s153 = smul.u32 4, %s23
        %s154 = smul.u32 2, %s22
        %s155 = smul.u32 4, %s23
        %v156 = vld [vmem:[%s133] sm:$0xff]
        %v157 = vmax.f32 %v156, 0.0
        %v159 = vrot.slane %v157, 1
        %v160 = vrot.slane %v157, 2
        %v161 = vrot.slane %v157, 3
        %vm162 = vcmask 1040384
        %v163 = vsel %vm162, %v157, %v159
        %vm164 = vcmask 1042434
        %v165 = vsel %vm164, %v160, %v161
        %vm166 = vcmask 1041408
        %v167 = vsel %vm166, %v163, %v165
        %vm168 = vcmask 1041409
        %v169 = vsel %vm168, %v157, %v159
        %vm170 = vcmask 1043459
        %v171 = vsel %vm170, %v160, %v161
        %vm172 = vcmask 1042433
        %v173 = vsel %vm172, %v169, %v171
        %v174 = vrot.slane %v173, 1
        %v177 = vlaneseq
        %vm178 = vcmp.ge.s32.totalorder %v177, 0
        %vm179 = vcmp.lt.s32.totalorder %v177, 512
        %vm180 = vmand %vm178, %vm179
        %181 = vst.msk [vmem:[%s152] ss:$2 sm:$0xf] %vm180, %v167
        %s182 = scalar_lea.vmem %s152, 8 [#allocation5]
        %183 = vst.msk [vmem:[%s182] ss:$2 sm:$0xf] %vm180, %v174
        %v184 = vsub.f32 0.0, %v156
        %v185 = vmax.f32 %v184, 0.0
        %v187 = vrot.slane %v185, 1
        %v188 = vrot.slane %v185, 2
        %v189 = vrot.slane %v185, 3
        %v190 = vsel %vm162, %v185, %v187
        %v191 = vsel %vm164, %v188, %v189
        %v192 = vsel %vm166, %v190, %v191
        %v193 = vsel %vm168, %v185, %v187
        %v194 = vsel %vm170, %v188, %v189
        %v195 = vsel %vm172, %v193, %v194
        %v196 = vrot.slane %v195, 1
        %s199 = scalar_lea.vmem %s152, 1 [#allocation5]
        %200 = vst.msk [vmem:[%s199] ss:$2 sm:$0xf] %vm180, %v192
        %s201 = scalar_lea.vmem %s152, 9 [#allocation5]
        %202 = vst.msk [vmem:[%s201] ss:$2 sm:$0xf] %vm180, %v196
        %s203 = sand.u32 %s68, 1
        %s204 = scalar_lea.sflag [#allocation4], %s203
        %s205 = sand.u32 %s68, 1
        %s206 = smul.addr %s205, 16
        %s207 = scalar_lea.vmem [#allocation5], %s206
        // Predicated region
        $region29: #{tpu_custom_call.1} parent=23 // pred_check
          %p208 = pneg %p78
        $region30: #{tpu_custom_call.1} parent=23 // pred_check_branch
          %210 = sbr.rel (%p208) target = $region32
        $region31: #{tpu_custom_call.1} parent=23 // pred_region
          %s211 = smul.u32 2, %s22
          %s212 = smul.u32 4, %s23
          %214 = vsyncadd %s204, 0
          %s215 = smul.addr %s211, 8
          %s216 = sadd.s32 %s212, %s215
          %s217 = smul.addr %s216, 2
          %s218 = scalar_lea.hbm %s1, %s217
          %s219 = sshll.u32 %s207, 4
          %s220 = int_to_ptr.vmem [resolvable:$true] %s219
          %s221 = sshll.u32 %s218, 4
          %s222 = int_to_ptr.hbm [resolvable:$true] %s221
          %227 = dma.vmem_to_hbm [thread:$0]  %s220, 256, %s222, %s204, 128, 256, 8
        $region32: #{tpu_custom_call.1} parent=23 // pred_fallthru
          _
      $region24: #{tpu_custom_call.1} parent=5 // pred_fallthru
        _
      %p228 = scmp.le.s32.totalorder 2, %s13
      // Predicated region
      $region33: #{tpu_custom_call.1} parent=5 // pred_check
        %p229 = pneg %p228
      $region34: #{tpu_custom_call.1} parent=5 // pred_check_branch
        %231 = sbr.rel (%p229) target = $region36
      $region35: #{tpu_custom_call.1} parent=5 // pred_region
        %s232 = ssub.s32 %s13, 2
        // Predicated region
        $region37: #{tpu_custom_call.1} parent=35 // pred_check
          %p233 = pneg %p84
        $region38: #{tpu_custom_call.1} parent=35 // pred_check_branch
          %235 = sbr.rel (%p233) target = $region40
        $region39: #{tpu_custom_call.1} parent=35 // pred_region
          %s236 = sand.u32 %s69, 1
          %s237 = scalar_lea.sflag [#allocation4], %s236
          %s238 = sand.u32 %s69, 1
          %s239 = smul.addr %s238, 16
          %s240 = scalar_lea.vmem [#allocation5], %s239
          %242 = dma.done %s237, 256
        $region40: #{tpu_custom_call.1} parent=35 // pred_fallthru
          _
      $region36: #{tpu_custom_call.1} parent=5 // pred_fallthru
        _
    $region6: #{tpu_custom_call.1} parent=1 // loop_footer
      %s17 = sadd.s32 1, %s13
    $region7: #{tpu_custom_call.1} parent=1 // loop_footer_branch
      %12 = sbr.rel target = $region3
    $region8: #{tpu_custom_call.1} parent=1 // loop_exit
      _
    %243 = vsyncpa [#allocation3], 1
    %s244 = scalar_lea.sflag [#allocation3], 1
    %245 = vsyncpa %s244, 1
    %246 = vsyncpa [#allocation4], 1
    %s247 = scalar_lea.sflag [#allocation4], 1
    %248 = vsyncpa %s247, 1

</llo_original>
